<compile_context>
chip_gen: v7x
topology: tpu7x:2x2x1
jax: 0.10.0
libtpu: 0.0.40
codegen_flags: <defaults>
</compile_context>

<pallas_src>
import random

import jax
import jax.numpy as jnp
from jax.experimental import pallas as pl
from jax.experimental.pallas import tpu as pltpu


# ---------------------------------------------------------------------------
# Helpers
# ---------------------------------------------------------------------------
def _resident_spec(a):
    """Whole-array block with a constant block index -> DMA'd into VMEM once."""
    n = a.ndim
    return pl.BlockSpec(tuple(a.shape), lambda *_: (0,) * n)


def _round_up(x, m):
    return ((x + m - 1) // m) * m


# ---------------------------------------------------------------------------
# Kernel 1: image encoder (1x1 conv as a flat matmul + ReLU) fused with the
#           MeanReshape reduction.  Tiled over the batch ("parallel" axis):
#           each grid step handles one image's L locations.
#   x     : (bs*L, C)  channels-last flattened image   -> block (L, C)
#   w, b  : (C, H), (1, H)                              resident
# outputs:
#   fvs   : (bs, L, H)  per-location features           -> block (1, L, H)
#   h0    : (bs, 1, H)  per-batch mean over L            -> block (1, 1, H)
# ---------------------------------------------------------------------------
def _encoder_kernel(x_ref, w_ref, b_ref, fvs_ref, h0_ref):
    f = jnp.dot(x_ref[...], w_ref[...], preferred_element_type=jnp.float32)
    f = jnp.maximum(f + b_ref[...], 0.0)                   # (L, H) ReLU
    fvs_ref[0] = f
    h0_ref[0] = jnp.mean(f, axis=0, keepdims=True)          # (1, H) mean over L


def image_encoder(imgs_nchw, params):
    bs, C, Hs, Ws = imgs_nchw.shape
    L = Hs * Ws
    H = params['w_enc'].shape[1]
    # NCHW -> (bs*L, C) channels-last flat slab (glue reshape outside the kernel)
    x = jnp.transpose(imgs_nchw, (0, 2, 3, 1)).reshape(bs * L, C)
    fvs, h0 = pl.pallas_call(
        _encoder_kernel,
        grid=(bs,),
        in_specs=[pl.BlockSpec((L, C), lambda b: (b, 0)),
                  pl.BlockSpec((C, H), lambda b: (0, 0)),
                  pl.BlockSpec((1, H), lambda b: (0, 0))],
        out_specs=[pl.BlockSpec((1, L, H), lambda b: (b, 0, 0)),
                   pl.BlockSpec((1, 1, H), lambda b: (b, 0, 0))],
        out_shape=[jax.ShapeDtypeStruct((bs, L, H), jnp.float32),
                   jax.ShapeDtypeStruct((bs, 1, H), jnp.float32)],
        compiler_params=pltpu.CompilerParams(
            dimension_semantics=("parallel",)),
    )(x, params['w_enc'], params['b_enc'])
    return fvs, h0.reshape(bs, H)


# ---------------------------------------------------------------------------
# Shared single-step attention-GRU decoder body (pure values + weight refs).
#   emb : (bs, H)   current input embedding
#   hid : (bs, H)   previous hidden state
# returns (logp_padded (bs, Vp), h_new (bs, H))
# ---------------------------------------------------------------------------
def _decode_step(emb, hid, fvs_ref,
                 w_attn_e_ref, w_attn_h_ref, b_attn_ref,
                 w_comb_e_ref, w_comb_c_ref, b_comb_ref,
                 w_i_ref, w_h_ref, b_i_ref, b_h_ref,
                 w_out_ref, b_out_ref):
    bs, H = emb.shape

    # Additive attention scores over L image locations.
    # Split fused [emb|hid] weight into two accumulating matmuls (no concat).
    scores = (jnp.dot(emb, w_attn_e_ref[...], preferred_element_type=jnp.float32)
              + jnp.dot(hid, w_attn_h_ref[...], preferred_element_type=jnp.float32)
              + b_attn_ref[...])                                            # (bs, L)
    scores = scores - jnp.max(scores, axis=-1, keepdims=True)
    e = jnp.exp(scores)
    attn = e * pl.reciprocal(jnp.sum(e, axis=-1, keepdims=True), approx=True)

    # Batched context: (bs, 1, L) x (bs, L, H) -> (bs, 1, H)
    ctx = jnp.einsum('bql,blh->bqh', attn[:, None, :], fvs_ref[...],
                     preferred_element_type=jnp.float32)
    context = ctx[:, 0, :]                                                  # (bs, H)

    # attn_combine(cat(emb, context)) + ReLU, with the concat split into two
    # accumulating matmuls.
    x = jnp.maximum(
        jnp.dot(emb, w_comb_e_ref[...], preferred_element_type=jnp.float32)
        + jnp.dot(context, w_comb_c_ref[...], preferred_element_type=jnp.float32)
        + b_comb_ref[...], 0.0)                                             # (bs, H)

    # GRU cell with fused [r|z|n] gate weights (PyTorch nn.GRU ordering).
    gi = jnp.dot(x, w_i_ref[...], preferred_element_type=jnp.float32) + b_i_ref[...]
    gh = jnp.dot(hid, w_h_ref[...], preferred_element_type=jnp.float32) + b_h_ref[...]
    r = jax.nn.sigmoid(gi[:, 0 * H:1 * H] + gh[:, 0 * H:1 * H])
    z = jax.nn.sigmoid(gi[:, 1 * H:2 * H] + gh[:, 1 * H:2 * H])
    n = jnp.tanh(gi[:, 2 * H:3 * H] + r * gh[:, 2 * H:3 * H])
    h_new = (1.0 - z) * n + z * hid

    # Output projection (vocab padded to a lane-dense multiple of 128; padded
    # columns carry bias -1e30 so they do not affect log_softmax or argmax).
    logits = (jnp.dot(h_new, w_out_ref[...], preferred_element_type=jnp.float32)
              + b_out_ref[...])                                             # (bs, Vp)
    m = jnp.max(logits, axis=-1, keepdims=True)
    lse = jnp.log(jnp.sum(jnp.exp(logits - m), axis=-1, keepdims=True)) + m
    return logits - lse, h_new


# ---------------------------------------------------------------------------
# Kernel 2a: teacher-forced decoder -- ALL T steps in one invocation
#            (grid=(1,), statically unrolled in-kernel time loop).
#   emb_seq : (T, bs, H)  pre-gathered teacher-forcing embeddings
#   fvs     : (bs, L, H), h0 : (bs, H), weights resident
#   logp    : (T*bs, Vp)  lane-dense output slab
# ---------------------------------------------------------------------------
def _tf_decoder_kernel(emb_seq_ref, fvs_ref, h0_ref,
                       w_attn_e_ref, w_attn_h_ref, b_attn_ref,
                       w_comb_e_ref, w_comb_c_ref, b_comb_ref,
                       w_i_ref, w_h_ref, b_i_ref, b_h_ref,
                       w_out_ref, b_out_ref,
                       logp_ref):
    T = emb_seq_ref.shape[0]
    bs = h0_ref.shape[0]
    weights = (w_attn_e_ref, w_attn_h_ref, b_attn_ref,
               w_comb_e_ref, w_comb_c_ref, b_comb_ref,
               w_i_ref, w_h_ref, b_i_ref, b_h_ref,
               w_out_ref, b_out_ref)
    hid = h0_ref[...]                       # MeanReshape initial hidden
    for t in range(T):                      # static unroll (T is small)
        logp, hid = _decode_step(emb_seq_ref[t], hid, fvs_ref, *weights)
        logp_ref[t * bs:(t + 1) * bs, :] = logp


# ---------------------------------------------------------------------------
# Kernel 2b: fused greedy decoder -- argmax + embedding gather in-kernel.
#   w_emb is padded to (Vp, H) (zero rows for padded tokens) and kept resident;
#   the next-token embedding is gathered with a one-hot matmul (fully
#   vectorized, no scalar extraction from vregs).
# ---------------------------------------------------------------------------
def _greedy_decoder_kernel(fvs_ref, h0_ref, w_emb_ref,
                           w_attn_e_ref, w_attn_h_ref, b_attn_ref,
                           w_comb_e_ref, w_comb_c_ref, b_comb_ref,
                           w_i_ref, w_h_ref, b_i_ref, b_h_ref,
                           w_out_ref, b_out_ref,
                           logp_ref):
    bs, H = h0_ref.shape
    Vp = w_emb_ref.shape[0]
    T = logp_ref.shape[0] // bs
    weights = (w_attn_e_ref, w_attn_h_ref, b_attn_ref,
               w_comb_e_ref, w_comb_c_ref, b_comb_ref,
               w_i_ref, w_h_ref, b_i_ref, b_h_ref,
               w_out_ref, b_out_ref)
    hid = h0_ref[...]
    # start token is 0 for every batch element (matches torch.tensor([0]*bs))
    emb = jnp.broadcast_to(w_emb_ref[0:1, :], (bs, H))
    for t in range(T):                      # static unroll
        logp, hid = _decode_step(emb, hid, fvs_ref, *weights)
        logp_ref[t * bs:(t + 1) * bs, :] = logp
        # greedy next token: first-argmax via iota/one-hot (padded columns are
        # ~-1e30 so never selected), then embedding gather as one-hot @ w_emb.
        ids = jax.lax.broadcasted_iota(jnp.int32, logp.shape, 1)
        mx = jnp.max(logp, axis=-1, keepdims=True)
        amax = jnp.min(jnp.where(logp >= mx, ids, Vp), axis=-1, keepdims=True)
        onehot = (ids == amax).astype(jnp.float32)                       # (bs, Vp)
        emb = jnp.dot(onehot, w_emb_ref[...], preferred_element_type=jnp.float32)


# ---------------------------------------------------------------------------
# Decoder wrappers
# ---------------------------------------------------------------------------
def _pad_output_params(params, Vp):
    V = params['w_out'].shape[1]
    w_out_p = jnp.pad(params['w_out'], ((0, 0), (0, Vp - V)))
    b_out_p = jnp.pad(params['b_out'], ((0, 0), (0, Vp - V)),
                      constant_values=-1e30)
    return w_out_p, b_out_p


def _decoder_weight_args(params, w_out_p, b_out_p):
    return (params['w_attn_e'], params['w_attn_h'], params['b_attn'],
            params['w_comb_e'], params['w_comb_c'], params['b_comb'],
            params['w_i'], params['w_h'], params['b_i'], params['b_h'],
            w_out_p, b_out_p)


def run_teacher_forced_decoder(params, fvs, h0, tokens):
    """tokens: (T, bs) int32 teacher-forcing schedule."""
    T, bs = tokens.shape
    V = params['w_out'].shape[1]
    Vp = _round_up(V, 128)
    w_out_p, b_out_p = _pad_output_params(params, Vp)
    emb_seq = params['w_emb'][tokens]              # (T, bs, H) gathered outside
    args = (emb_seq, fvs, h0) + _decoder_weight_args(params, w_out_p, b_out_p)
    logp_flat = pl.pallas_call(
        _tf_decoder_kernel,
        grid=(1,),
        in_specs=[_resident_spec(a) for a in args],
        out_specs=pl.BlockSpec((T * bs, Vp), lambda *_: (0, 0)),
        out_shape=jax.ShapeDtypeStruct((T * bs, Vp), jnp.float32),
        compiler_params=pltpu.CompilerParams(
            dimension_semantics=("arbitrary",)),
    )(*args)
    return logp_flat.reshape(T, bs, Vp)[:, :, :V]


def run_greedy_decoder(params, fvs, h0, T):
    bs = h0.shape[0]
    V = params['w_out'].shape[1]
    Vp = _round_up(V, 128)
    w_out_p, b_out_p = _pad_output_params(params, Vp)
    w_emb_p = jnp.pad(params['w_emb'], ((0, Vp - V), (0, 0)))
    args = (fvs, h0, w_emb_p) + _decoder_weight_args(params, w_out_p, b_out_p)
    logp_flat = pl.pallas_call(
        _greedy_decoder_kernel,
        grid=(1,),
        in_specs=[_resident_spec(a) for a in args],
        out_specs=pl.BlockSpec((T * bs, Vp), lambda *_: (0, 0)),
        out_shape=jax.ShapeDtypeStruct((T * bs, Vp), jnp.float32),
        compiler_params=pltpu.CompilerParams(
            dimension_semantics=("arbitrary",)),
    )(*args)
    return logp_flat.reshape(T, bs, Vp)[:, :, :V]


# ---------------------------------------------------------------------------
# Parameters (deterministic synthetic init -- no checkpoint loading).
# Attention / combine weights are pre-split by input ( *_e acts on the
# embedding, *_h / *_c on hidden / context ); w_i / w_h columns are [r|z|n]
# in PyTorch GRU gate order.
# ---------------------------------------------------------------------------
def init_params(key, C, hidden, L, vocab):
    ks = jax.random.split(key, 10)
    s = 0.1
    H = hidden
    nrm = lambda k, shp: jax.random.normal(k, shp, jnp.float32) * s
    return {
        'w_enc': nrm(ks[0], (C, H)),
        'b_enc': jnp.zeros((1, H), jnp.float32),
        'w_emb': nrm(ks[1], (vocab, H)),
        'w_attn_e': nrm(ks[2], (H, L)),
        'w_attn_h': nrm(ks[3], (H, L)),
        'b_attn': jnp.zeros((1, L), jnp.float32),
        'w_comb_e': nrm(ks[4], (H, H)),
        'w_comb_c': nrm(ks[5], (H, H)),
        'b_comb': jnp.zeros((1, H), jnp.float32),
        'w_i': nrm(ks[6], (H, 3 * H)),
        'w_h': nrm(ks[7], (H, 3 * H)),
        'b_i': jnp.zeros((1, 3 * H), jnp.float32),
        'b_h': jnp.zeros((1, 3 * H), jnp.float32),
        'w_out': nrm(ks[8], (H, vocab)),
        'b_out': jnp.zeros((1, vocab), jnp.float32),
    }


# ---------------------------------------------------------------------------
# Full ImageCaptioning.forward
# ---------------------------------------------------------------------------
def image_captioning_forward(params, imgs, true_sentences, max_length,
                             use_teacher_forcing):
    bs = imgs.shape[0]
    fvs, h0 = image_encoder(imgs, params)          # (bs, L, H), (bs, H)
    if use_teacher_forcing:
        # step 0 uses SOS token 0 (matches torch.tensor([0]*bs));
        # step di+1 uses true_sentences.T[di].
        true_t = jnp.asarray(true_sentences, jnp.int32).T          # (seq, bs)
        tokens = jnp.concatenate(
            [jnp.zeros((1, bs), jnp.int32), true_t[:max_length - 1]], axis=0)
        logp = run_teacher_forced_decoder(params, fvs, h0, tokens)
    else:
        logp = run_greedy_decoder(params, fvs, h0, max_length)
    return [logp[t] for t in range(max_length)]


if __name__ == "__main__":
    key = jax.random.PRNGKey(0)
    k_img, k_sent, k_param = jax.random.split(key, 3)

    # small shapes consistent with the module
    bs, C, spatial = 2, 4, 16
    hidden = 32
    vocab = 32
    max_caption_length = 8
    L = spatial * spatial

    imgs = jax.random.normal(k_img, (bs, C, spatial, spatial), jnp.float32)  # NCHW
    true_sentences = jax.random.randint(k_sent, (bs, max_caption_length), 0,
                                        vocab, dtype=jnp.int32)
    params = init_params(k_param, C, hidden, L, vocab)

    # teacher-forcing coin flip (made deterministic: ratio = 1.0)
    random.seed(0)
    teacher_forcing_ratio = 1.0
    use_teacher_forcing = random.random() < teacher_forcing_ratio

    outs = image_captioning_forward(params, imgs, true_sentences,
                                    max_caption_length, use_teacher_forcing)
    stacked = jax.block_until_ready(jnp.stack(outs, axis=0))
    assert stacked.shape == (max_caption_length, bs, vocab)
    assert bool(jnp.all(jnp.isfinite(stacked)))

    # also exercise the fused greedy path once
    outs_g = image_captioning_forward(params, imgs, true_sentences,
                                      max_caption_length, False)
    stacked_g = jax.block_until_ready(jnp.stack(outs_g, axis=0))
    assert stacked_g.shape == (max_caption_length, bs, vocab)
    assert bool(jnp.all(jnp.isfinite(stacked_g)))

    print("KERNEL_OK")
</pallas_src>

<mosaic_0001>
module attributes {stable_mosaic.version = 11 : i64} {
  func.func @_encoder_kernel(%arg0: i32, %arg1: memref<256x4xf32, #tpu.memory_space<vmem>>, %arg2: memref<4x32xf32, #tpu.memory_space<vmem>>, %arg3: memref<1x32xf32, #tpu.memory_space<vmem>>, %arg4: memref<1x256x32xf32, #tpu.memory_space<vmem>>, %arg5: memref<1x1x32xf32, #tpu.memory_space<vmem>>) attributes {dimension_semantics = [#tpu.dimension_semantics<parallel>], iteration_bounds = array<i64: 2>, scalar_prefetch = 0 : i64, scratch_operands = 0 : i64, tpu.core_type = #tpu.core_type<tc>, window_params = [{transform_indices = @transform_0, window_bounds = array<i64: 256, 4>}, {pipeline_mode = #tpu.pipeline_mode<synchronous>, transform_indices = @transform_1, window_bounds = array<i64: 4, 32>}, {pipeline_mode = #tpu.pipeline_mode<synchronous>, transform_indices = @transform_2, window_bounds = array<i64: 1, 32>}, {transform_indices = @transform_3, window_bounds = array<i64: 1, 256, 32>}, {transform_indices = @transform_4, window_bounds = array<i64: 1, 1, 32>}]} {
    %c0 = arith.constant 0 : index
    %c0_0 = arith.constant 0 : index
    %0 = vector.load %arg1[%c0, %c0_0] : memref<256x4xf32, #tpu.memory_space<vmem>>, vector<256x4xf32>
    %c0_1 = arith.constant 0 : index
    %c0_2 = arith.constant 0 : index
    %1 = vector.load %arg2[%c0_1, %c0_2] : memref<4x32xf32, #tpu.memory_space<vmem>>, vector<4x32xf32>
    %cst = arith.constant dense<0.000000e+00> : vector<256x32xf32>
    %2 = tpu.matmul %0, %1, %cst {dimension_numbers = #tpu.dot_dimension_numbers<[1], [0], [0], [1], [0, 0, 1, 1], [], []>} : vector<256x4xf32>, vector<4x32xf32>, vector<256x32xf32> -> vector<256x32xf32>
    %c0_3 = arith.constant 0 : index
    %c0_4 = arith.constant 0 : index
    %3 = vector.load %arg3[%c0_3, %c0_4] : memref<1x32xf32, #tpu.memory_space<vmem>>, vector<1x32xf32>
    %4 = vector.broadcast %3 : vector<1x32xf32> to vector<256x32xf32>
    %5 = arith.addf %2, %4 : vector<256x32xf32>
    %cst_5 = arith.constant 0.000000e+00 : f32
    %6 = vector.broadcast %cst_5 : f32 to vector<256x32xf32>
    %7 = arith.maximumf %5, %6 : vector<256x32xf32>
    %c0_6 = arith.constant 0 : index
    %c0_7 = arith.constant 0 : index
    %c0_8 = arith.constant 0 : index
    %8 = vector.load %arg4[%c0_6, %c0_7, %c0_8] : memref<1x256x32xf32, #tpu.memory_space<vmem>>, vector<1x256x32xf32>
    %9 = vector.shape_cast %8 : vector<1x256x32xf32> to vector<256x32xf32>
    %10 = vector.shape_cast %7 : vector<256x32xf32> to vector<1x256x32xf32>
    tpu.vector_store %arg4[%c0_6, %c0_7, %c0_8], %10 {strides = array<i32>} : memref<1x256x32xf32, #tpu.memory_space<vmem>>, vector<1x256x32xf32>,
    %cst_9 = arith.constant dense<0.000000e+00> : vector<32xf32>
    %11 = vector.multi_reduction <add>, %7, %cst_9 [0] : vector<256x32xf32> to vector<32xf32>
    %12 = vector.shape_cast %11 : vector<32xf32> to vector<1x32xf32>
    %cst_10 = arith.constant 2.560000e+02 : f32
    %13 = vector.broadcast %cst_10 : f32 to vector<1x32xf32>
    %14 = arith.divf %12, %13 : vector<1x32xf32>
    %c0_11 = arith.constant 0 : index
    %c0_12 = arith.constant 0 : index
    %c0_13 = arith.constant 0 : index
    %15 = vector.load %arg5[%c0_11, %c0_12, %c0_13] : memref<1x1x32xf32, #tpu.memory_space<vmem>>, vector<1x1x32xf32>
    %16 = vector.shape_cast %15 : vector<1x1x32xf32> to vector<1x32xf32>
    %17 = vector.shape_cast %14 : vector<1x32xf32> to vector<1x1x32xf32>
    tpu.vector_store %arg5[%c0_11, %c0_12, %c0_13], %17 {strides = array<i32>} : memref<1x1x32xf32, #tpu.memory_space<vmem>>, vector<1x1x32xf32>,
    return
  }
  func.func @transform_0(%arg0: i32) -> (i32, i32) {
    %c0_i32 = arith.constant 0 : i32
    %c0_i32_0 = arith.constant 0 : i32
    return %arg0, %c0_i32 : i32, i32
  }
  func.func @transform_1(%arg0: i32) -> (i32, i32) {
    %c0_i32 = arith.constant 0 : i32
    %c0_i32_0 = arith.constant 0 : i32
    %c0_i32_1 = arith.constant 0 : i32
    return %c0_i32, %c0_i32_0 : i32, i32
  }
  func.func @transform_2(%arg0: i32) -> (i32, i32) {
    %c0_i32 = arith.constant 0 : i32
    %c0_i32_0 = arith.constant 0 : i32
    %c0_i32_1 = arith.constant 0 : i32
    return %c0_i32, %c0_i32_0 : i32, i32
  }
  func.func @transform_3(%arg0: i32) -> (i32, i32, i32) {
    %c0_i32 = arith.constant 0 : i32
    %c0_i32_0 = arith.constant 0 : i32
    %c0_i32_1 = arith.constant 0 : i32
    return %arg0, %c0_i32, %c0_i32_0 : i32, i32, i32
  }
  func.func @transform_4(%arg0: i32) -> (i32, i32, i32) {
    %c0_i32 = arith.constant 0 : i32
    %c0_i32_0 = arith.constant 0 : i32
    %c0_i32_1 = arith.constant 0 : i32
    return %arg0, %c0_i32, %c0_i32_0 : i32, i32, i32
  }
}

</mosaic_0001>

<llo_original>
// kernel: tpu_custom_call.1
$region0: #{tpu_custom_call.1}
  #allocation0 [shape = 'u32[]', space=smem, size = 0x4, offset = 0x4, fixed_abs, tag = 'smem constant byte address 0x4 - core index']
  #allocation1 [shape = 'u32[144,128]{1,0:T(1,128)}', space=vmem, size = 0x12000, scoped, tag = 'internal scratch']
  %s0 = inlined_call_operand.vmem [shape: f32[512,4], index: 0, kind: input, shape index: {}]
  %s1 = inlined_call_operand.vmem [shape: f32[4,32], index: 1, kind: input, shape index: {}]
  %s2 = inlined_call_operand.vmem [shape: f32[1,32], index: 2, kind: input, shape index: {}]
  %s3 = inlined_call_operand.vmem [shape: f32[2,256,32], index: 3, kind: output, shape index: {0}]
  %s4 = inlined_call_operand.hbm [shape: f32[2,1,32], index: 4, kind: output, shape index: {1}]
  %5 = xla_tuple %s3, %s4
  %s6 = sld [smem:[#allocation0]]
  $region53: #{tpu_custom_call.1} parent=0
    _
  %s8 = ssub.s32 1, %s6
  %s9 = scalar_select 0, %s8, %s6
  $region1: #{tpu_custom_call.1} parent=0
    #allocation2 [shape = 'u8[1024]{0}', space=vmem, size = 0x400, scoped, tag = 'output window, operand 1']
    #allocation3 [shape = 's32[2]{0}', space=sflag, size = 0x8, scoped, tag = 'scoped memory for tpu_custom_call.1']
    %10 = vsyncpa [#allocation3], 0
    %s11 = scalar_lea.sflag [#allocation3], 1
    %12 = vsyncpa %s11, 0
    loop: start=0, step=1, limit=4
    $region2: #{tpu_custom_call.1} parent=1 // loop_pre_header
      _
    $region3: #{tpu_custom_call.1} parent=1 // loop_header
      %s14 = sphi 0, %s18
      %p15 = scmp.ge.s32.totalorder %s14, 4
      %s24 = sphi 0, %s26
      %s27 = sphi 0, %s24
      %s28 = sphi 0, %s27
      %s44 = sphi 0, %s28
      %s48 = sphi 0, %s48
      %s50 = sphi 0, %s48
      %s51 = sphi 0, %s50
      %s65 = sphi 0, %s51
      %s69 = sphi 0, %s69
      %s71 = sphi 0, %s69
      %s72 = sphi 0, %s71
      %s86 = sphi 0, %s72
      %s92 = sphi 0, %s94
      %s95 = sphi 0, %s92
      %s96 = sphi 0, %s95
      %s112 = sphi 0, %s96
      %s118 = sphi 0, %s120
      %s121 = sphi 0, %s118
      %s122 = sphi 0, %s121
      %s138 = sphi 0, %s122
    $region4: #{tpu_custom_call.1} parent=1 // loop_header_branch
      %17 = sbr.rel (%p15) target = $region8
    $region5: #{tpu_custom_call.1} parent=1 // loop_body
      %s19 = ssub.s32 %s14, 1
      %s20 = ssub.s32 %s14, 2
      %s21 = sadd.s32 %s14, 1
      %s22 = ssub.s32 %s14, %s21
      %p23 = scmp.eq.s32.totalorder %s22, 0
      %s25 = sadd.s32 %s24, 1
      %s26 = scalar_select %p23, %s24, %s25
      %p29 = pneg %p23
      %p30 = scmp.eq.s32.totalorder %s14, 1
      %p31 = por %p29, %p30
      %p32 = scmp.ne.s32.totalorder %s24, %s27
      %p33 = scmp.eq.s32.totalorder %s14, 0
      %p34 = por %p32, %p33
      %p35 = scmp.ne.s32.totalorder %s24, %s27
      %p36 = scmp.eq.s32.totalorder %s19, 1
      %p37 = por %p35, %p36
      %p38 = scmp.ne.s32.totalorder %s27, %s28
      %p39 = scmp.eq.s32.totalorder %s19, 0
      %p40 = por %p38, %p39
      %p41 = scmp.ne.s32.totalorder %s27, %s28
      %p42 = scmp.eq.s32.totalorder %s20, 1
      %p43 = por %p41, %p42
      %p45 = scmp.ne.s32.totalorder %s28, %s44
      %p46 = scmp.eq.s32.totalorder %s20, 0
      %p47 = por %p45, %p46
      %s49 = sadd.s32 %s48, 1
      %p52 = scmp.eq.s32.totalorder %s14, 1
      %p53 = scmp.ne.s32.totalorder %s48, %s50
      %p54 = scmp.eq.s32.totalorder %s14, 0
      %p55 = por %p53, %p54
      %p56 = scmp.ne.s32.totalorder %s48, %s50
      %p57 = scmp.eq.s32.totalorder %s19, 1
      %p58 = por %p56, %p57
      %p59 = scmp.ne.s32.totalorder %s50, %s51
      %p60 = scmp.eq.s32.totalorder %s19, 0
      %p61 = por %p59, %p60
      %p62 = scmp.ne.s32.totalorder %s50, %s51
      %p63 = scmp.eq.s32.totalorder %s20, 1
      %p64 = por %p62, %p63
      %p66 = scmp.ne.s32.totalorder %s51, %s65
      %p67 = scmp.eq.s32.totalorder %s20, 0
      %p68 = por %p66, %p67
      %s70 = sadd.s32 %s69, 1
      %p73 = scmp.eq.s32.totalorder %s14, 1
      %p74 = scmp.ne.s32.totalorder %s69, %s71
      %p75 = scmp.eq.s32.totalorder %s14, 0
      %p76 = por %p74, %p75
      %p77 = scmp.ne.s32.totalorder %s69, %s71
      %p78 = scmp.eq.s32.totalorder %s19, 1
      %p79 = por %p77, %p78
      %p80 = scmp.ne.s32.totalorder %s71, %s72
      %p81 = scmp.eq.s32.totalorder %s19, 0
      %p82 = por %p80, %p81
      %p83 = scmp.ne.s32.totalorder %s71, %s72
      %p84 = scmp.eq.s32.totalorder %s20, 1
      %p85 = por %p83, %p84
      %p87 = scmp.ne.s32.totalorder %s72, %s86
      %p88 = scmp.eq.s32.totalorder %s20, 0
      %p89 = por %p87, %p88
      %s90 = ssub.s32 %s14, %s21
      %p91 = scmp.eq.s32.totalorder %s90, 0
      %s93 = sadd.s32 %s92, 1
      %s94 = scalar_select %p91, %s92, %s93
      %p97 = pneg %p91
      %p98 = scmp.eq.s32.totalorder %s14, 1
      %p99 = por %p97, %p98
      %p100 = scmp.ne.s32.totalorder %s92, %s95
      %p101 = scmp.eq.s32.totalorder %s14, 0
      %p102 = por %p100, %p101
      %p103 = scmp.ne.s32.totalorder %s92, %s95
      %p104 = scmp.eq.s32.totalorder %s19, 1
      %p105 = por %p103, %p104
      %p106 = scmp.ne.s32.totalorder %s95, %s96
      %p107 = scmp.eq.s32.totalorder %s19, 0
      %p108 = por %p106, %p107
      %p109 = scmp.ne.s32.totalorder %s95, %s96
      %p110 = scmp.eq.s32.totalorder %s20, 1
      %p111 = por %p109, %p110
      %p113 = scmp.ne.s32.totalorder %s96, %s112
      %p114 = scmp.eq.s32.totalorder %s20, 0
      %p115 = por %p113, %p114
      %s116 = ssub.s32 %s14, %s21
      %p117 = scmp.eq.s32.totalorder %s116, 0
      %s119 = sadd.s32 %s118, 1
      %s120 = scalar_select %p117, %s118, %s119
      %p123 = pneg %p117
      %p124 = scmp.eq.s32.totalorder %s14, 1
      %p125 = por %p123, %p124
      %p126 = scmp.ne.s32.totalorder %s118, %s121
      %p127 = scmp.eq.s32.totalorder %s14, 0
      %p128 = por %p126, %p127
      %p129 = scmp.ne.s32.totalorder %s118, %s121
      %p130 = scmp.eq.s32.totalorder %s19, 1
      %p131 = por %p129, %p130
      %p132 = scmp.ne.s32.totalorder %s121, %s122
      %p133 = scmp.eq.s32.totalorder %s19, 0
      %p134 = por %p132, %p133
      %p135 = scmp.ne.s32.totalorder %s121, %s122
      %p136 = scmp.eq.s32.totalorder %s20, 1
      %p137 = por %p135, %p136
      %p139 = scmp.ne.s32.totalorder %s122, %s138
      %p140 = scmp.eq.s32.totalorder %s20, 0
      %p141 = por %p139, %p140
      %p142 = scmp.le.s32.totalorder 1, %s14
      %p143 = scmp.lt.s32.totalorder %s14, 3
      %p144 = pnand %p142, %p143
      %p145 = pneg %p144
      // Predicated region
      $region9: #{tpu_custom_call.1} parent=5 // pred_check
        _
      $region10: #{tpu_custom_call.1} parent=5 // pred_check_branch
        %147 = sbr.rel (%p144) target = $region12
      $region11: #{tpu_custom_call.1} parent=5 // pred_region
        %s148 = ssub.s32 %s14, 1
        // Predicated region
        $region13: #{tpu_custom_call.1} parent=11 // pred_check
          %p149 = pneg %p61
        $region14: #{tpu_custom_call.1} parent=11 // pred_check_branch
          %151 = sbr.rel (%p149) target = $region16
        $region15: #{tpu_custom_call.1} parent=11 // pred_region
          _
        $region16: #{tpu_custom_call.1} parent=11 // pred_fallthru
          _
        // Predicated region
        $region17: #{tpu_custom_call.1} parent=11 // pred_check
          %p152 = pneg %p82
        $region18: #{tpu_custom_call.1} parent=11 // pred_check_branch
          %154 = sbr.rel (%p152) target = $region20
        $region19: #{tpu_custom_call.1} parent=11 // pred_region
          _
        $region20: #{tpu_custom_call.1} parent=11 // pred_fallthru
          _
      $region12: #{tpu_custom_call.1} parent=5 // pred_fallthru
        _
      %p155 = scmp.lt.s32.totalorder %s14, 2
      // Predicated region
      $region21: #{tpu_custom_call.1} parent=5 // pred_check
        %p156 = pneg %p155
      $region22: #{tpu_custom_call.1} parent=5 // pred_check_branch
        %158 = sbr.rel (%p156) target = $region24
      $region23: #{tpu_custom_call.1} parent=5 // pred_region
        // Predicated region
        $region25: #{tpu_custom_call.1} parent=23 // pred_check
          %p159 = pneg %p34
        $region26: #{tpu_custom_call.1} parent=23 // pred_check_branch
          %161 = sbr.rel (%p159) target = $region28
        $region27: #{tpu_custom_call.1} parent=23 // pred_region
          %s162 = smul.u32 32, %s14
          %p163 = scmp.lt.s32.totalorder %s162, 63
          %s164 = scalar_select %p163, %s162, 63
          %s165 = smul.addr %s164, 8
          %s166 = scalar_lea.vmem %s0, %s165
          %s167 = smul.u32 32, %s14
        $region28: #{tpu_custom_call.1} parent=23 // pred_fallthru
          _
      $region24: #{tpu_custom_call.1} parent=5 // pred_fallthru
        _
      %p168 = scmp.le.s32.totalorder 1, %s14
      %p169 = scmp.lt.s32.totalorder %s14, 3
      %p170 = pnand %p168, %p169
      %p171 = pneg %p170
      // Predicated region
      $region29: #{tpu_custom_call.1} parent=5 // pred_check
        _
      $region30: #{tpu_custom_call.1} parent=5 // pred_check_branch
        %173 = sbr.rel (%p170) target = $region32
      $region31: #{tpu_custom_call.1} parent=5 // pred_region
        %s174 = ssub.s32 %s14, 1
        %s175 = smul.u32 32, %s19
        %p176 = scmp.lt.s32.totalorder %s175, 63
        %s177 = scalar_select %p176, %s175, 63
        %s178 = smul.addr %s177, 8
        %s179 = scalar_lea.vmem %s0, %s178
        %p180 = pneg %p40
        %p181 = pneg %p37
        %p182 = pneg %p61
        %p183 = pneg %p58
        %p184 = pneg %p82
        %p185 = pneg %p79
        %p186 = pneg %p108
        %p187 = pneg %p105
        %p188 = scmp.lt.s32.totalorder %s19, 1
        %s189 = scalar_select %p188, %s19, 1
        %s190 = smul.addr %s189, 32
        %s191 = smul.addr %s190, 8
        %s192 = scalar_lea.vmem %s3, %s191
        %p193 = pneg %p134
        %p194 = pneg %p131
        %s195 = sand.u32 %s121, 1
        %s196 = scalar_lea.sflag [#allocation3], %s195
        %s197 = sand.u32 %s121, 1
        %s198 = scalar_lea.vmem [#allocation2], %s197
        %s199 = smul.u32 32, %s19
        %p200 = scmp.lt.s32.totalorder %s199, 63
        %s201 = scalar_select %p200, %s199, 63
        %s202 = smul.addr %s201, 8
        %s203 = scalar_lea.vmem %s0, %s202
        %s204 = smul.u32 32, %s19
        %p205 = scmp.lt.s32.totalorder %s19, 1
        %s206 = scalar_select %p205, %s19, 1
        %s207 = smul.addr %s206, 32
        %s208 = smul.addr %s207, 8
        %s209 = scalar_lea.vmem %s3, %s208
        %v210 = vld [vmem:[%s203] sm:$0xff]
        %v211 = vld [vmem:[%s203 + $0x8] sm:$0xff]
        %v212 = vld [vmem:[%s203 + $0x10] sm:$0xff]
        %v213 = vld [vmem:[%s203 + $0x18] sm:$0xff]
        %v214 = vld [vmem:[%s203 + $0x20] sm:$0xff]
        %v215 = vld [vmem:[%s203 + $0x28] sm:$0xff]
        %v216 = vld [vmem:[%s203 + $0x30] sm:$0xff]
        %v217 = vld [vmem:[%s203 + $0x38] sm:$0xff]
        %v218 = vld [vmem:[%s203 + $0x40] sm:$0xff]
        %v219 = vld [vmem:[%s203 + $0x48] sm:$0xff]
        %v220 = vld [vmem:[%s203 + $0x50] sm:$0xff]
        %v221 = vld [vmem:[%s203 + $0x58] sm:$0xff]
        %v222 = vld [vmem:[%s203 + $0x60] sm:$0xff]
        %v223 = vld [vmem:[%s203 + $0x68] sm:$0xff]
        %v224 = vld [vmem:[%s203 + $0x70] sm:$0xff]
        %v225 = vld [vmem:[%s203 + $0x78] sm:$0xff]
        %v226 = vld [vmem:[%s203 + $0x80] sm:$0xff]
        %v227 = vld [vmem:[%s203 + $0x88] sm:$0xff]
        %v228 = vld [vmem:[%s203 + $0x90] sm:$0xff]
        %v229 = vld [vmem:[%s203 + $0x98] sm:$0xff]
        %v230 = vld [vmem:[%s203 + $0xa0] sm:$0xff]
        %v231 = vld [vmem:[%s203 + $0xa8] sm:$0xff]
        %v232 = vld [vmem:[%s203 + $0xb0] sm:$0xff]
        %v233 = vld [vmem:[%s203 + $0xb8] sm:$0xff]
        %v234 = vld [vmem:[%s203 + $0xc0] sm:$0xff]
        %v235 = vld [vmem:[%s203 + $0xc8] sm:$0xff]
        %v236 = vld [vmem:[%s203 + $0xd0] sm:$0xff]
        %v237 = vld [vmem:[%s203 + $0xd8] sm:$0xff]
        %v238 = vld [vmem:[%s203 + $0xe0] sm:$0xff]
        %v239 = vld [vmem:[%s203 + $0xe8] sm:$0xff]
        %v240 = vld [vmem:[%s203 + $0xf0] sm:$0xff]
        %v241 = vld [vmem:[%s203 + $0xf8] sm:$0xff]
        %v242 = vld [vmem:[%s1] sm:$0xf]
        %v243 = vld [vmem:[%s2] sm:$0x1]
        %v245 = vlaneseq
        %v246 = vshrl.u32 %v245, 7
        %v247 = vsub.s32 0, %v246
        %v248 = vrot.slane %v243, %v247
        %vm250 = vcmask 31744
        %v252 = vsel %vm250, %v210, 0
        %v255 = vsel %vm250, %v211, 0
        %v258 = vsel %vm250, %v212, 0
        %v261 = vsel %vm250, %v213, 0
        %v264 = vsel %vm250, %v214, 0
        %v267 = vsel %vm250, %v215, 0
        %v270 = vsel %vm250, %v216, 0
        %v273 = vsel %vm250, %v217, 0
        %v276 = vsel %vm250, %v218, 0
        %v279 = vsel %vm250, %v219, 0
        %v282 = vsel %vm250, %v220, 0
        %v285 = vsel %vm250, %v221, 0
        %v288 = vsel %vm250, %v222, 0
        %v291 = vsel %vm250, %v223, 0
        %v294 = vsel %vm250, %v224, 0
        %v297 = vsel %vm250, %v225, 0
        %v300 = vsel %vm250, %v226, 0
        %v303 = vsel %vm250, %v227, 0
        %v306 = vsel %vm250, %v228, 0
        %v309 = vsel %vm250, %v229, 0
        %v312 = vsel %vm250, %v230, 0
        %v315 = vsel %vm250, %v231, 0
        %v318 = vsel %vm250, %v232, 0
        %v321 = vsel %vm250, %v233, 0
        %v324 = vsel %vm250, %v234, 0
        %v327 = vsel %vm250, %v235, 0
        %v330 = vsel %vm250, %v236, 0
        %v333 = vsel %vm250, %v237, 0
        %v336 = vsel %vm250, %v238, 0
        %v339 = vsel %vm250, %v239, 0
        %v342 = vsel %vm250, %v240, 0
        %v345 = vsel %vm250, %v241, 0
        %vm347 = vcmask 1043456
        %v349 = vsel %vm347, %v242, 0
        %351 = vmatprep.subr.mxu0 0.0
        %352 = vmatpush1.msra.mxu0 %v349
        %353 = vmatprep.subr.mxu0 0.0
        %354 = vmatpush1.msra.mxu0 0.0
        %355 = vmatprep.subr.mxu0 0.0
        %356 = vmatpush1.msra.mxu0 0.0
        %357 = vmatprep.subr.mxu0 0.0
        %358 = vmatpush1.msra.mxu0 0.0
        %359 = vmatprep.subr.mxu0 0.0
        %360 = vmatpush1.msra.mxu0 0.0
        %361 = vmatprep.subr.mxu0 0.0
        %362 = vmatpush1.msra.mxu0 0.0
        %363 = vmatprep.subr.mxu0 0.0
        %364 = vmatpush1.msra.mxu0 0.0
        %365 = vmatprep.subr.mxu0 0.0
        %366 = vmatpush1.msra.mxu0 0.0
        %367 = vmatprep.subr.mxu0 0.0
        %368 = vmatpush1.msra.mxu0 0.0
        %369 = vmatprep.subr.mxu0 0.0
        %370 = vmatpush1.msra.mxu0 0.0
        %371 = vmatprep.subr.mxu0 0.0
        %372 = vmatpush1.msra.mxu0 0.0
        %373 = vmatprep.subr.mxu0 0.0
        %374 = vmatpush1.msra.mxu0 0.0
        %375 = vmatprep.subr.mxu0 0.0
        %376 = vmatpush1.msra.mxu0 0.0
        %377 = vmatprep.subr.mxu0 0.0
        %378 = vmatpush1.msra.mxu0 0.0
        %379 = vmatprep.subr.mxu0 0.0
        %380 = vmatpush1.msra.mxu0 0.0
        %381 = vmatprep.subr.mxu0 0.0
        %382 = vmatpush1.msra.mxu0 0.0
        %383 = vmatprep.subr.mxu0 0.0
        %384 = vmatpush1.msra.mxu0 0.0
        %385 = vmatprep.subr.mxu0 0.0
        %386 = vmatpush1.msra.mxu0 0.0
        %387 = vmatprep.subr.mxu0 0.0
        %388 = vmatpush1.msra.mxu0 0.0
        %389 = vmatprep.subr.mxu0 0.0
        %390 = vmatpush1.msra.mxu0 0.0
        %391 = vmatprep.subr.mxu0 0.0
        %392 = vmatpush1.msra.mxu0 0.0
        %393 = vmatprep.subr.mxu0 0.0
        %394 = vmatpush1.msra.mxu0 0.0
        %395 = vmatprep.subr.mxu0 0.0
        %396 = vmatpush1.msra.mxu0 0.0
        %397 = vmatprep.subr.mxu0 0.0
        %398 = vmatpush1.msra.mxu0 0.0
        %399 = vmatprep.subr.mxu0 0.0
        %400 = vmatpush1.msra.mxu0 0.0
        %401 = vmatprep.subr.mxu0 0.0
        %402 = vmatpush1.msra.mxu0 0.0
        %403 = vmatprep.subr.mxu0 0.0
        %404 = vmatpush1.msra.mxu0 0.0
        %405 = vmatprep.subr.mxu0 0.0
        %406 = vmatpush1.msra.mxu0 0.0
        %407 = vmatprep.subr.mxu0 0.0
        %408 = vmatpush1.msra.mxu0 0.0
        %409 = vmatprep.subr.mxu0 0.0
        %410 = vmatpush1.msra.mxu0 0.0
        %411 = vmatprep.subr.mxu0 0.0
        %412 = vmatpush1.msra.mxu0 0.0
        %413 = vmatprep.subr.mxu0 0.0
        %414 = vmatpush1.msra.mxu0 0.0
        %415 = vmatprep.mubr.f32.mxu0 0.0
        %416 = vmatmul.mubr.f32.gmra.mrb[0].mxu0 %v252
        %v417 = vpop.f32.mrb[0].mxu0
        %v418 = vadd.f32 %v248, %v417
        %v419 = vpop.f32.mrb[0].mxu0
        %420 = vmatprep.mubr.f32.mxu0 0.0
        %421 = vmatmul.mubr.f32.gmra.mrb[0].mxu0 %v255
        %v422 = vpop.f32.mrb[0].mxu0
        %v423 = vadd.f32 %v248, %v422
        %v424 = vpop.f32.mrb[0].mxu0
        %425 = vmatprep.mubr.f32.mxu0 0.0
        %426 = vmatmul.mubr.f32.gmra.mrb[0].mxu0 %v258
        %v427 = vpop.f32.mrb[0].mxu0
        %v428 = vadd.f32 %v248, %v427
        %v429 = vpop.f32.mrb[0].mxu0
        %430 = vmatprep.mubr.f32.mxu0 0.0
        %431 = vmatmul.mubr.f32.gmra.mrb[0].mxu0 %v261
        %v432 = vpop.f32.mrb[0].mxu0
        %v433 = vadd.f32 %v248, %v432
        %v434 = vpop.f32.mrb[0].mxu0
        %435 = vmatprep.mubr.f32.mxu0 0.0
        %436 = vmatmul.mubr.f32.gmra.mrb[0].mxu0 %v264
        %v437 = vpop.f32.mrb[0].mxu0
        %v438 = vadd.f32 %v248, %v437
        %v439 = vpop.f32.mrb[0].mxu0
        %440 = vmatprep.mubr.f32.mxu0 0.0
        %441 = vmatmul.mubr.f32.gmra.mrb[0].mxu0 %v267
        %v442 = vpop.f32.mrb[0].mxu0
        %v443 = vadd.f32 %v248, %v442
        %v444 = vpop.f32.mrb[0].mxu0
        %445 = vmatprep.mubr.f32.mxu0 0.0
        %446 = vmatmul.mubr.f32.gmra.mrb[0].mxu0 %v270
        %v447 = vpop.f32.mrb[0].mxu0
        %v448 = vadd.f32 %v248, %v447
        %v449 = vpop.f32.mrb[0].mxu0
        %450 = vmatprep.mubr.f32.mxu0 0.0
        %451 = vmatmul.mubr.f32.gmra.mrb[0].mxu0 %v273
        %v452 = vpop.f32.mrb[0].mxu0
        %v453 = vadd.f32 %v248, %v452
        %v454 = vpop.f32.mrb[0].mxu0
        %455 = vmatprep.mubr.f32.mxu0 0.0
        %456 = vmatmul.mubr.f32.gmra.mrb[0].mxu0 %v276
        %v457 = vpop.f32.mrb[0].mxu0
        %v458 = vadd.f32 %v248, %v457
        %v459 = vpop.f32.mrb[0].mxu0
        %460 = vmatprep.mubr.f32.mxu0 0.0
        %461 = vmatmul.mubr.f32.gmra.mrb[0].mxu0 %v279
        %v462 = vpop.f32.mrb[0].mxu0
        %v463 = vadd.f32 %v248, %v462
        %v464 = vpop.f32.mrb[0].mxu0
        %465 = vmatprep.mubr.f32.mxu0 0.0
        %466 = vmatmul.mubr.f32.gmra.mrb[0].mxu0 %v282
        %v467 = vpop.f32.mrb[0].mxu0
        %v468 = vadd.f32 %v248, %v467
        %v469 = vpop.f32.mrb[0].mxu0
        %470 = vmatprep.mubr.f32.mxu0 0.0
        %471 = vmatmul.mubr.f32.gmra.mrb[0].mxu0 %v285
        %v472 = vpop.f32.mrb[0].mxu0
        %v473 = vadd.f32 %v248, %v472
        %v474 = vpop.f32.mrb[0].mxu0
        %475 = vmatprep.mubr.f32.mxu0 0.0
        %476 = vmatmul.mubr.f32.gmra.mrb[0].mxu0 %v288
        %v477 = vpop.f32.mrb[0].mxu0
        %v478 = vadd.f32 %v248, %v477
        %v479 = vpop.f32.mrb[0].mxu0
        %480 = vmatprep.mubr.f32.mxu0 0.0
        %481 = vmatmul.mubr.f32.gmra.mrb[0].mxu0 %v291
        %v482 = vpop.f32.mrb[0].mxu0
        %v483 = vadd.f32 %v248, %v482
        %v484 = vpop.f32.mrb[0].mxu0
        %485 = vmatprep.mubr.f32.mxu0 0.0
        %486 = vmatmul.mubr.f32.gmra.mrb[0].mxu0 %v294
        %v487 = vpop.f32.mrb[0].mxu0
        %v488 = vadd.f32 %v248, %v487
        %v489 = vpop.f32.mrb[0].mxu0
        %490 = vmatprep.mubr.f32.mxu0 0.0
        %491 = vmatmul.mubr.f32.gmra.mrb[0].mxu0 %v297
        %v492 = vpop.f32.mrb[0].mxu0
        %v493 = vadd.f32 %v248, %v492
        %v494 = vpop.f32.mrb[0].mxu0
        %495 = vmatprep.mubr.f32.mxu0 0.0
        %496 = vmatmul.mubr.f32.gmra.mrb[0].mxu0 %v300
        %v497 = vpop.f32.mrb[0].mxu0
        %v498 = vadd.f32 %v248, %v497
        %v499 = vpop.f32.mrb[0].mxu0
        %500 = vmatprep.mubr.f32.mxu0 0.0
        %501 = vmatmul.mubr.f32.gmra.mrb[0].mxu0 %v303
        %v502 = vpop.f32.mrb[0].mxu0
        %v503 = vadd.f32 %v248, %v502
        %v504 = vpop.f32.mrb[0].mxu0
        %505 = vmatprep.mubr.f32.mxu0 0.0
        %506 = vmatmul.mubr.f32.gmra.mrb[0].mxu0 %v306
        %v507 = vpop.f32.mrb[0].mxu0
        %v508 = vadd.f32 %v248, %v507
        %v509 = vpop.f32.mrb[0].mxu0
        %510 = vmatprep.mubr.f32.mxu0 0.0
        %511 = vmatmul.mubr.f32.gmra.mrb[0].mxu0 %v309
        %v512 = vpop.f32.mrb[0].mxu0
        %v513 = vadd.f32 %v248, %v512
        %v514 = vpop.f32.mrb[0].mxu0
        %515 = vmatprep.mubr.f32.mxu0 0.0
        %516 = vmatmul.mubr.f32.gmra.mrb[0].mxu0 %v312
        %v517 = vpop.f32.mrb[0].mxu0
        %v518 = vadd.f32 %v248, %v517
        %v519 = vpop.f32.mrb[0].mxu0
        %520 = vmatprep.mubr.f32.mxu0 0.0
        %521 = vmatmul.mubr.f32.gmra.mrb[0].mxu0 %v315
        %v522 = vpop.f32.mrb[0].mxu0
        %v523 = vadd.f32 %v248, %v522
        %v524 = vpop.f32.mrb[0].mxu0
        %525 = vmatprep.mubr.f32.mxu0 0.0
        %526 = vmatmul.mubr.f32.gmra.mrb[0].mxu0 %v318
        %v527 = vpop.f32.mrb[0].mxu0
        %v528 = vadd.f32 %v248, %v527
        %v529 = vpop.f32.mrb[0].mxu0
        %530 = vmatprep.mubr.f32.mxu0 0.0
        %531 = vmatmul.mubr.f32.gmra.mrb[0].mxu0 %v321
        %v532 = vpop.f32.mrb[0].mxu0
        %v533 = vadd.f32 %v248, %v532
        %v534 = vpop.f32.mrb[0].mxu0
        %535 = vmatprep.mubr.f32.mxu0 0.0
        %536 = vmatmul.mubr.f32.gmra.mrb[0].mxu0 %v324
        %v537 = vpop.f32.mrb[0].mxu0
        %v538 = vadd.f32 %v248, %v537
        %v539 = vpop.f32.mrb[0].mxu0
        %540 = vmatprep.mubr.f32.mxu0 0.0
        %541 = vmatmul.mubr.f32.gmra.mrb[0].mxu0 %v327
        %v542 = vpop.f32.mrb[0].mxu0
        %v543 = vadd.f32 %v248, %v542
        %v544 = vpop.f32.mrb[0].mxu0
        %545 = vmatprep.mubr.f32.mxu0 0.0
        %546 = vmatmul.mubr.f32.gmra.mrb[0].mxu0 %v330
        %v547 = vpop.f32.mrb[0].mxu0
        %v548 = vadd.f32 %v248, %v547
        %v549 = vpop.f32.mrb[0].mxu0
        %550 = vmatprep.mubr.f32.mxu0 0.0
        %551 = vmatmul.mubr.f32.gmra.mrb[0].mxu0 %v333
        %v552 = vpop.f32.mrb[0].mxu0
        %v553 = vadd.f32 %v248, %v552
        %v554 = vpop.f32.mrb[0].mxu0
        %555 = vmatprep.mubr.f32.mxu0 0.0
        %556 = vmatmul.mubr.f32.gmra.mrb[0].mxu0 %v336
        %v557 = vpop.f32.mrb[0].mxu0
        %v558 = vadd.f32 %v248, %v557
        %v559 = vpop.f32.mrb[0].mxu0
        %560 = vmatprep.mubr.f32.mxu0 0.0
        %561 = vmatmul.mubr.f32.gmra.mrb[0].mxu0 %v339
        %v562 = vpop.f32.mrb[0].mxu0
        %v563 = vadd.f32 %v248, %v562
        %v564 = vpop.f32.mrb[0].mxu0
        %565 = vmatprep.mubr.f32.mxu0 0.0
        %566 = vmatmul.mubr.f32.gmra.mrb[0].mxu0 %v342
        %v567 = vpop.f32.mrb[0].mxu0
        %v568 = vadd.f32 %v248, %v567
        %v569 = vpop.f32.mrb[0].mxu0
        %570 = vmatprep.mubr.f32.mxu0 0.0
        %571 = vmatmul.mubr.f32.gmra.mrb[0].mxu0 %v345
        %v572 = vpop.f32.mrb[0].mxu0
        %v573 = vadd.f32 %v248, %v572
        %v574 = vpop.f32.mrb[0].mxu0
        %575 = vdwg.mxu0
        %v576 = vmax.f32 %v418, 0.0
        %v577 = vmax.f32 %v423, 0.0
        %v578 = vmax.f32 %v428, 0.0
        %v579 = vmax.f32 %v433, 0.0
        %v580 = vmax.f32 %v438, 0.0
        %v581 = vmax.f32 %v443, 0.0
        %v582 = vmax.f32 %v448, 0.0
        %v583 = vmax.f32 %v453, 0.0
        %v584 = vmax.f32 %v458, 0.0
        %v585 = vmax.f32 %v463, 0.0
        %v586 = vmax.f32 %v468, 0.0
        %v587 = vmax.f32 %v473, 0.0
        %v588 = vmax.f32 %v478, 0.0
        %v589 = vmax.f32 %v483, 0.0
        %v590 = vmax.f32 %v488, 0.0
        %v591 = vmax.f32 %v493, 0.0
        %v592 = vmax.f32 %v498, 0.0
        %v593 = vmax.f32 %v503, 0.0
        %v594 = vmax.f32 %v508, 0.0
        %v595 = vmax.f32 %v513, 0.0
        %v596 = vmax.f32 %v518, 0.0
        %v597 = vmax.f32 %v523, 0.0
        %v598 = vmax.f32 %v528, 0.0
        %v599 = vmax.f32 %v533, 0.0
        %v600 = vmax.f32 %v538, 0.0
        %v601 = vmax.f32 %v543, 0.0
        %v602 = vmax.f32 %v548, 0.0
        %v603 = vmax.f32 %v553, 0.0
        %v604 = vmax.f32 %v558, 0.0
        %v605 = vmax.f32 %v563, 0.0
        %v606 = vmax.f32 %v568, 0.0
        %v607 = vmax.f32 %v573, 0.0
        %vm608 = vcmask 261120
        %609 = vst.msk [vmem:[%s209] sm:$0xff] %vm608, %v576
        %610 = vst.msk [vmem:[%s209 + $0x8] sm:$0xff] %vm608, %v577
        %611 = vst.msk [vmem:[%s209 + $0x10] sm:$0xff] %vm608, %v578
        %612 = vst.msk [vmem:[%s209 + $0x18] sm:$0xff] %vm608, %v579
        %613 = vst.msk [vmem:[%s209 + $0x20] sm:$0xff] %vm608, %v580
        %614 = vst.msk [vmem:[%s209 + $0x28] sm:$0xff] %vm608, %v581
        %615 = vst.msk [vmem:[%s209 + $0x30] sm:$0xff] %vm608, %v582
        %616 = vst.msk [vmem:[%s209 + $0x38] sm:$0xff] %vm608, %v583
        %617 = vst.msk [vmem:[%s209 + $0x40] sm:$0xff] %vm608, %v584
        %618 = vst.msk [vmem:[%s209 + $0x48] sm:$0xff] %vm608, %v585
        %619 = vst.msk [vmem:[%s209 + $0x50] sm:$0xff] %vm608, %v586
        %620 = vst.msk [vmem:[%s209 + $0x58] sm:$0xff] %vm608, %v587
        %621 = vst.msk [vmem:[%s209 + $0x60] sm:$0xff] %vm608, %v588
        %622 = vst.msk [vmem:[%s209 + $0x68] sm:$0xff] %vm608, %v589
        %623 = vst.msk [vmem:[%s209 + $0x70] sm:$0xff] %vm608, %v590
        %624 = vst.msk [vmem:[%s209 + $0x78] sm:$0xff] %vm608, %v591
        %625 = vst.msk [vmem:[%s209 + $0x80] sm:$0xff] %vm608, %v592
        %626 = vst.msk [vmem:[%s209 + $0x88] sm:$0xff] %vm608, %v593
        %627 = vst.msk [vmem:[%s209 + $0x90] sm:$0xff] %vm608, %v594
        %628 = vst.msk [vmem:[%s209 + $0x98] sm:$0xff] %vm608, %v595
        %629 = vst.msk [vmem:[%s209 + $0xa0] sm:$0xff] %vm608, %v596
        %630 = vst.msk [vmem:[%s209 + $0xa8] sm:$0xff] %vm608, %v597
        %631 = vst.msk [vmem:[%s209 + $0xb0] sm:$0xff] %vm608, %v598
        %632 = vst.msk [vmem:[%s209 + $0xb8] sm:$0xff] %vm608, %v599
        %633 = vst.msk [vmem:[%s209 + $0xc0] sm:$0xff] %vm608, %v600
        %634 = vst.msk [vmem:[%s209 + $0xc8] sm:$0xff] %vm608, %v601
        %635 = vst.msk [vmem:[%s209 + $0xd0] sm:$0xff] %vm608, %v602
        %636 = vst.msk [vmem:[%s209 + $0xd8] sm:$0xff] %vm608, %v603
        %637 = vst.msk [vmem:[%s209 + $0xe0] sm:$0xff] %vm608, %v604
        %638 = vst.msk [vmem:[%s209 + $0xe8] sm:$0xff] %vm608, %v605
        %639 = vst.msk [vmem:[%s209 + $0xf0] sm:$0xff] %vm608, %v606
        %640 = vst.msk [vmem:[%s209 + $0xf8] sm:$0xff] %vm608, %v607
        %v641 = vsel %vm608, %v576, 0.0
        %v642 = vsel %vm608, %v577, 0.0
        %v643 = vadd.f32 %v641, %v642
        %v644 = vsel %vm608, %v578, 0.0
        %v645 = vadd.f32 %v643, %v644
        %v646 = vsel %vm608, %v579, 0.0
        %v647 = vadd.f32 %v645, %v646
        %v648 = vsel %vm608, %v580, 0.0
        %v649 = vadd.f32 %v647, %v648
        %v650 = vsel %vm608, %v581, 0.0
        %v651 = vadd.f32 %v649, %v650
        %v652 = vsel %vm608, %v582, 0.0
        %v653 = vadd.f32 %v651, %v652
        %v654 = vsel %vm608, %v583, 0.0
        %v655 = vadd.f32 %v653, %v654
        %v656 = vsel %vm608, %v584, 0.0
        %v657 = vadd.f32 %v655, %v656
        %v658 = vsel %vm608, %v585, 0.0
        %v659 = vadd.f32 %v657, %v658
        %v660 = vsel %vm608, %v586, 0.0
        %v661 = vadd.f32 %v659, %v660
        %v662 = vsel %vm608, %v587, 0.0
        %v663 = vadd.f32 %v661, %v662
        %v664 = vsel %vm608, %v588, 0.0
        %v665 = vadd.f32 %v663, %v664
        %v666 = vsel %vm608, %v589, 0.0
        %v667 = vadd.f32 %v665, %v666
        %v668 = vsel %vm608, %v590, 0.0
        %v669 = vadd.f32 %v667, %v668
        %v670 = vsel %vm608, %v591, 0.0
        %v671 = vadd.f32 %v669, %v670
        %v672 = vsel %vm608, %v592, 0.0
        %v673 = vadd.f32 %v671, %v672
        %v674 = vsel %vm608, %v593, 0.0
        %v675 = vadd.f32 %v673, %v674
        %v676 = vsel %vm608, %v594, 0.0
        %v677 = vadd.f32 %v675, %v676
        %v678 = vsel %vm608, %v595, 0.0
        %v679 = vadd.f32 %v677, %v678
        %v680 = vsel %vm608, %v596, 0.0
        %v681 = vadd.f32 %v679, %v680
        %v682 = vsel %vm608, %v597, 0.0
        %v683 = vadd.f32 %v681, %v682
        %v684 = vsel %vm608, %v598, 0.0
        %v685 = vadd.f32 %v683, %v684
        %v686 = vsel %vm608, %v599, 0.0
        %v687 = vadd.f32 %v685, %v686
        %v688 = vsel %vm608, %v600, 0.0
        %v689 = vadd.f32 %v687, %v688
        %v690 = vsel %vm608, %v601, 0.0
        %v691 = vadd.f32 %v689, %v690
        %v692 = vsel %vm608, %v602, 0.0
        %v693 = vadd.f32 %v691, %v692
        %v694 = vsel %vm608, %v603, 0.0
        %v695 = vadd.f32 %v693, %v694
        %v696 = vsel %vm608, %v604, 0.0
        %v697 = vadd.f32 %v695, %v696
        %v698 = vsel %vm608, %v605, 0.0
        %v699 = vadd.f32 %v697, %v698
        %v700 = vsel %vm608, %v606, 0.0
        %v701 = vadd.f32 %v699, %v700
        %v702 = vsel %vm608, %v607, 0.0
        %v703 = vadd.f32 %v701, %v702
        %v704 = vrot.slane %v703, 4
        %v705 = vadd.f32 %v703, %v704
        %v706 = vrot.slane %v705, 2
        %v707 = vadd.f32 %v705, %v706
        %v708 = vrot.slane %v707, 1
        %v709 = vadd.f32 %v707, %v708
        %v710 = vrcp.pop 256.0
        %v711 = vmul.f32 %v709, %v710
        %vm712 = vcmask 253952
        %713 = vst.msk [vmem:[%s198] sm:$0x1] %vm712, %v711
        %p714 = scmp.lt.s32.totalorder %s19, 1
        %s715 = scalar_select %p714, %s19, 1
        %s716 = smul.addr %s715, 32
        %s717 = smul.addr %s716, 8
        %s718 = scalar_lea.vmem %s3, %s717
        %s719 = sand.u32 %s121, 1
        %s720 = scalar_lea.sflag [#allocation3], %s719
        %s721 = sand.u32 %s121, 1
        %s722 = scalar_lea.vmem [#allocation2], %s721
        // Predicated region
        $region33: #{tpu_custom_call.1} parent=31 // pred_check
          %p723 = pneg %p105
        $region34: #{tpu_custom_call.1} parent=31 // pred_check_branch
          %725 = sbr.rel (%p723) target = $region36
        $region35: #{tpu_custom_call.1} parent=31 // pred_region
          _
        $region36: #{tpu_custom_call.1} parent=31 // pred_fallthru
          _
        // Predicated region
        $region37: #{tpu_custom_call.1} parent=31 // pred_check
          %p726 = pneg %p131
        $region38: #{tpu_custom_call.1} parent=31 // pred_check_branch
          %728 = sbr.rel (%p726) target = $region40
        $region39: #{tpu_custom_call.1} parent=31 // pred_region
          %s730 = ssub.s32 16, 16
          %731 = vsyncadd %s720, %s730
          %s732 = smul.addr %s19, 16
          %s733 = scalar_lea.hbm %s4, %s732
          %s735 = sshll.u32 %s722, 4
          %s736 = int_to_ptr.vmem [resolvable:$true] %s735
          %738 = dma.vmem_to_hbm [thread:$0]  %s736, 16, %s733, %s720
        $region40: #{tpu_custom_call.1} parent=31 // pred_fallthru
          _
      $region32: #{tpu_custom_call.1} parent=5 // pred_fallthru
        _
      %p739 = scmp.le.s32.totalorder 2, %s14
      // Predicated region
      $region41: #{tpu_custom_call.1} parent=5 // pred_check
        %p740 = pneg %p739
      $region42: #{tpu_custom_call.1} parent=5 // pred_check_branch
        %742 = sbr.rel (%p740) target = $region44
      $region43: #{tpu_custom_call.1} parent=5 // pred_region
        %s743 = ssub.s32 %s14, 2
        // Predicated region
        $region45: #{tpu_custom_call.1} parent=43 // pred_check
          %p744 = pneg %p111
        $region46: #{tpu_custom_call.1} parent=43 // pred_check_branch
          %746 = sbr.rel (%p744) target = $region48
        $region47: #{tpu_custom_call.1} parent=43 // pred_region
          %p747 = scmp.lt.s32.totalorder %s20, 1
          %s748 = scalar_select %p747, %s20, 1
          %s749 = smul.addr %s748, 32
          %s750 = smul.addr %s749, 8
          %s751 = scalar_lea.vmem %s3, %s750
        $region48: #{tpu_custom_call.1} parent=43 // pred_fallthru
          _
        // Predicated region
        $region49: #{tpu_custom_call.1} parent=43 // pred_check
          %p752 = pneg %p137
        $region50: #{tpu_custom_call.1} parent=43 // pred_check_branch
          %754 = sbr.rel (%p752) target = $region52
        $region51: #{tpu_custom_call.1} parent=43 // pred_region
          %s755 = sand.u32 %s122, 1
          %s756 = scalar_lea.sflag [#allocation3], %s755
          %s757 = sand.u32 %s122, 1
          %s758 = scalar_lea.vmem [#allocation2], %s757
          %759 = dma.done %s756, 16
        $region52: #{tpu_custom_call.1} parent=43 // pred_fallthru
          _
      $region44: #{tpu_custom_call.1} parent=5 // pred_fallthru
        _
    $region6: #{tpu_custom_call.1} parent=1 // loop_footer
      %s18 = sadd.s32 1, %s14
    $region7: #{tpu_custom_call.1} parent=1 // loop_footer_branch
      %13 = sbr.rel target = $region3
    $region8: #{tpu_custom_call.1} parent=1 // loop_exit
      _
    %760 = vsyncpa [#allocation3], 1
    %s761 = scalar_lea.sflag [#allocation3], 1
    %762 = vsyncpa %s761, 1

</llo_original>
